<compile_context>
chip_gen: v7x
topology: tpu7x:2x2x1
jax: 0.10.0
libtpu: 0.0.40
codegen_flags: <defaults>
</compile_context>

<pallas_src>
import functools

import jax
import jax.numpy as jnp
from jax.experimental import pallas as pl
from jax.experimental.pallas import tpu as pltpu


def _pick_tile_m(M, C, target_bytes=2 * 1024 * 1024):
    """Largest lane tile that (a) is a multiple of 128, (b) divides M exactly,
    and (c) keeps a (C, tile_m) f32 block under ~target_bytes so the pipeline's
    double-buffered input/output tiles fit the smallest scoped-VMEM budgets."""
    if M % 128 != 0:
        # Fall back to a full-M block (BlockSpec allows block dim == array dim).
        return M
    cap = max(128, (target_bytes // (4 * max(C, 1))) // 128 * 128)
    best, t = 128, 128
    while t <= min(M, cap):
        if M % t == 0:
            best = t
        t += 128
    return best


def _bn_partial_stats_kernel(x_ref, mean_ref, m2_ref, *, tile_count):
    """Pass 1: per-(batch-element, channel) mean / centered M2.

    x_ref:   (C, tile_m) view of x[n, :, m0:m0+tile_m]   (N dim squeezed).
    mean_ref, m2_ref: (C, 1) resident output blocks for batch element n —
    accumulated across the M-tile grid axis with Chan's parallel combine.
    """
    j = pl.program_id(1)

    @pl.when(j == 0)
    def _():
        mean_ref[...] = jnp.zeros_like(mean_ref)
        m2_ref[...] = jnp.zeros_like(m2_ref)

    x = x_ref[...].astype(jnp.float32)                       # (C, tile_m)
    inv_nb = jnp.float32(1.0 / tile_count)
    mean_b = jnp.sum(x, axis=1, keepdims=True) * inv_nb      # (C, 1)
    d = x - mean_b
    m2_b = jnp.sum(d * d, axis=1, keepdims=True)             # (C, 1)

    # Chan combine of equal-sized tiles: n_a = j*tile_count, n_b = tile_count.
    jf = (j + 1).astype(jnp.float32)
    r = 1.0 / jf                                             # n_b / (n_a + n_b)
    delta = mean_b - mean_ref[...]
    mean_ref[...] = mean_ref[...] + delta * r
    m2_ref[...] = (m2_ref[...] + m2_b
                   + delta * delta * (jnp.float32(tile_count) * (jf - 1.0) * r))


def _bn_apply_kernel(x_ref, scale_ref, shift_ref, o_ref, *, act):
    """Pass 2: y = x * scale + shift (+ optional fused elementwise fn)."""
    y = x_ref[...].astype(jnp.float32) * scale_ref[...] + shift_ref[...]
    if act is not None:
        y = act(y)
    o_ref[...] = y.astype(o_ref.dtype)


def batchnorm3d_pallas(x, gamma, beta, eps=1e-5, act=None):
    """Training-mode BatchNorm3d forward. x: (N, C, D, H, W)."""
    N, C, D, H, W = x.shape
    M = D * H * W
    xr = x.reshape(N, C, M)                     # free: NCDHW is contiguous
    tm = _pick_tile_m(M, C)
    num_m = M // tm

    # ---- pass 1: per-batch-element partial stats (parallel over N) ---------
    stats_kernel = functools.partial(_bn_partial_stats_kernel, tile_count=tm)
    mean_n, m2_n = pl.pallas_call(
        stats_kernel,
        out_shape=(jax.ShapeDtypeStruct((N, C, 1), jnp.float32),
                   jax.ShapeDtypeStruct((N, C, 1), jnp.float32)),
        grid=(N, num_m),
        in_specs=[
            pl.BlockSpec((None, C, tm), lambda i, j: (i, 0, j)),  # x tile
        ],
        out_specs=(pl.BlockSpec((None, C, 1), lambda i, j: (i, 0, 0)),
                   pl.BlockSpec((None, C, 1), lambda i, j: (i, 0, 0))),
        compiler_params=pltpu.CompilerParams(
            dimension_semantics=("parallel", "arbitrary")),
    )(xr)

    # ---- exact pooled-moment combine over N (tiny O(N*C) JAX epilogue) -----
    mean_n = mean_n[:, :, 0]                                  # (N, C)
    m2_n = m2_n[:, :, 0]                                      # (N, C)
    mean = jnp.mean(mean_n, axis=0)                           # (C,), equal counts
    m2_tot = jnp.sum(m2_n + jnp.float32(M) * (mean_n - mean[None, :]) ** 2,
                     axis=0)                                  # (C,)
    var = m2_tot * jnp.float32(1.0 / (N * M))                 # biased variance
    inv_std = jax.lax.rsqrt(var + jnp.float32(eps))
    g = gamma.astype(jnp.float32)
    b = beta.astype(jnp.float32)
    scale = (g * inv_std).reshape(C, 1)
    shift = (b - mean * g * inv_std).reshape(C, 1)

    # ---- pass 2: normalize (+ optional fused elementwise fn) ---------------
    apply_kernel = functools.partial(_bn_apply_kernel, act=act)
    y = pl.pallas_call(
        apply_kernel,
        out_shape=jax.ShapeDtypeStruct((N, C, M), x.dtype),
        grid=(N, num_m),
        in_specs=[
            pl.BlockSpec((None, C, tm), lambda i, j: (i, 0, j)),  # x tile
            pl.BlockSpec((C, 1), lambda i, j: (0, 0)),            # scale
            pl.BlockSpec((C, 1), lambda i, j: (0, 0)),            # shift
        ],
        out_specs=pl.BlockSpec((None, C, tm), lambda i, j: (i, 0, j)),
        compiler_params=pltpu.CompilerParams(
            dimension_semantics=("parallel", "parallel")),
    )(xr, scale, shift)

    return y.reshape(N, C, D, H, W)


def pre_norm(x, gamma, beta, fn, eps=1e-5, fuse_elementwise=False, **kwargs):
    """PreNorm.forward: fn(BatchNorm3d(x), **kwargs).

    If `fn` is a purely elementwise jax function, pass fuse_elementwise=True
    to trace it into the normalize kernel (saves a full HBM round-trip).
    Arbitrary (non-elementwise) submodules are applied outside the kernel.
    """
    if fuse_elementwise:
        return batchnorm3d_pallas(x, gamma, beta, eps=eps,
                                  act=lambda z: fn(z, **kwargs))
    return fn(batchnorm3d_pallas(x, gamma, beta, eps=eps), **kwargs)


if __name__ == "__main__":
    key = jax.random.PRNGKey(0)
    kx, kg, kb = jax.random.split(key, 3)

    # Small shapes consistent with BatchNorm3d input (N, C, D, H, W).
    N, C, D, H, W = 2, 4, 4, 8, 8
    x = jax.random.normal(kx, (N, C, D, H, W), dtype=jnp.float32) + 0.5

    # nn.BatchNorm3d(dim) affine params (randomized to exercise the broadcast).
    gamma = 1.0 + 0.1 * jax.random.normal(kg, (C,), dtype=jnp.float32)
    beta = 0.1 * jax.random.normal(kb, (C,), dtype=jnp.float32)

    # Pure-JAX reference (training-mode BatchNorm3d forward).
    ref_mean = jnp.mean(x, axis=(0, 2, 3, 4), keepdims=True)
    ref_var = jnp.mean((x - ref_mean) ** 2, axis=(0, 2, 3, 4), keepdims=True)
    ref_bn = (x - ref_mean) * jax.lax.rsqrt(ref_var + 1e-5)
    ref_bn = ref_bn * gamma.reshape(1, C, 1, 1, 1) + beta.reshape(1, C, 1, 1, 1)

    # Case 1: fn = identity, applied outside the kernel (generic path).
    fn_id = lambda z: z
    out = jax.block_until_ready(pre_norm(x, gamma, beta, fn_id))
    assert out.shape == x.shape and out.dtype == x.dtype
    assert jnp.max(jnp.abs(out - fn_id(ref_bn))) < 1e-4

    # Case 2: elementwise fn fused into the normalize pass.
    fn_elt = lambda z: jax.nn.relu(z) * 1.5
    out_fused = jax.block_until_ready(
        pre_norm(x, gamma, beta, fn_elt, fuse_elementwise=True))
    assert out_fused.shape == x.shape and out_fused.dtype == x.dtype
    assert jnp.max(jnp.abs(out_fused - fn_elt(ref_bn))) < 1e-4

    print("KERNEL_OK")
</pallas_src>

<mosaic_0001>
module attributes {stable_mosaic.version = 11 : i64} {
  func.func @_bn_partial_stats_kernel(%arg0: i32, %arg1: i32, %arg2: memref<1x4x256xf32, #tpu.memory_space<vmem>>, %arg3: memref<1x4x1xf32, #tpu.memory_space<vmem>>, %arg4: memref<1x4x1xf32, #tpu.memory_space<vmem>>) attributes {dimension_semantics = [#tpu.dimension_semantics<parallel>, #tpu.dimension_semantics<arbitrary>], iteration_bounds = array<i64: 2, 1>, scalar_prefetch = 0 : i64, scratch_operands = 0 : i64, tpu.core_type = #tpu.core_type<tc>, window_params = [{transform_indices = @transform_0, window_bounds = array<i64: 1, 4, 256>}, {transform_indices = @transform_1, window_bounds = array<i64: 1, 4, 1>}, {transform_indices = @transform_2, window_bounds = array<i64: 1, 4, 1>}]} {
    %c0_i32 = arith.constant 0 : i32
    %0 = arith.cmpi eq, %arg1, %c0_i32 : i32
    %1 = arith.extui %0 : i1 to i32
    %c0_i32_0 = arith.constant 0 : i32
    %2 = arith.cmpi ne, %1, %c0_i32_0 : i32
    scf.if %2 {
      %cst_23 = arith.constant 0.000000e+00 : f32
      %41 = vector.broadcast %cst_23 : f32 to vector<4x1xf32>
      %c0_24 = arith.constant 0 : index
      %c0_25 = arith.constant 0 : index
      %c0_26 = arith.constant 0 : index
      %42 = vector.load %arg3[%c0_24, %c0_25, %c0_26] : memref<1x4x1xf32, #tpu.memory_space<vmem>>, vector<1x4x1xf32>
      %43 = vector.shape_cast %42 : vector<1x4x1xf32> to vector<4x1xf32>
      %44 = vector.shape_cast %41 : vector<4x1xf32> to vector<1x4x1xf32>
      tpu.vector_store %arg3[%c0_24, %c0_25, %c0_26], %44 {strides = array<i32>} : memref<1x4x1xf32, #tpu.memory_space<vmem>>, vector<1x4x1xf32>,
      %cst_27 = arith.constant 0.000000e+00 : f32
      %45 = vector.broadcast %cst_27 : f32 to vector<4x1xf32>
      %c0_28 = arith.constant 0 : index
      %c0_29 = arith.constant 0 : index
      %c0_30 = arith.constant 0 : index
      %46 = vector.load %arg4[%c0_28, %c0_29, %c0_30] : memref<1x4x1xf32, #tpu.memory_space<vmem>>, vector<1x4x1xf32>
      %47 = vector.shape_cast %46 : vector<1x4x1xf32> to vector<4x1xf32>
      %48 = vector.shape_cast %45 : vector<4x1xf32> to vector<1x4x1xf32>
      tpu.vector_store %arg4[%c0_28, %c0_29, %c0_30], %48 {strides = array<i32>} : memref<1x4x1xf32, #tpu.memory_space<vmem>>, vector<1x4x1xf32>,
    } else {
    }
    %c0 = arith.constant 0 : index
    %c0_1 = arith.constant 0 : index
    %c0_2 = arith.constant 0 : index
    %3 = vector.load %arg2[%c0, %c0_1, %c0_2] : memref<1x4x256xf32, #tpu.memory_space<vmem>>, vector<1x4x256xf32>
    %4 = vector.shape_cast %3 : vector<1x4x256xf32> to vector<4x256xf32>
    %cst = arith.constant dense<0.000000e+00> : vector<4xf32>
    %5 = vector.multi_reduction <add>, %4, %cst [1] : vector<4x256xf32> to vector<4xf32>
    %6 = vector.shape_cast %5 : vector<4xf32> to vector<4x1xf32>
    %cst_3 = arith.constant 3.906250e-03 : f32
    %7 = vector.broadcast %cst_3 : f32 to vector<4x1xf32>
    %8 = arith.mulf %6, %7 : vector<4x1xf32>
    %9 = vector.broadcast %8 : vector<4x1xf32> to vector<4x256xf32>
    %10 = arith.subf %4, %9 : vector<4x256xf32>
    %11 = arith.mulf %10, %10 : vector<4x256xf32>
    %cst_4 = arith.constant dense<0.000000e+00> : vector<4xf32>
    %12 = vector.multi_reduction <add>, %11, %cst_4 [1] : vector<4x256xf32> to vector<4xf32>
    %13 = vector.shape_cast %12 : vector<4xf32> to vector<4x1xf32>
    %c1_i32 = arith.constant 1 : i32
    %14 = arith.addi %arg1, %c1_i32 : i32
    %15 = arith.sitofp %14 : i32 to f32
    %cst_5 = arith.constant 1.000000e+00 : f32
    %16 = arith.divf %cst_5, %15 : f32
    %c0_6 = arith.constant 0 : index
    %c0_7 = arith.constant 0 : index
    %c0_8 = arith.constant 0 : index
    %17 = vector.load %arg3[%c0_6, %c0_7, %c0_8] : memref<1x4x1xf32, #tpu.memory_space<vmem>>, vector<1x4x1xf32>
    %18 = vector.shape_cast %17 : vector<1x4x1xf32> to vector<4x1xf32>
    %19 = arith.subf %8, %18 : vector<4x1xf32>
    %c0_9 = arith.constant 0 : index
    %c0_10 = arith.constant 0 : index
    %c0_11 = arith.constant 0 : index
    %20 = vector.load %arg3[%c0_9, %c0_10, %c0_11] : memref<1x4x1xf32, #tpu.memory_space<vmem>>, vector<1x4x1xf32>
    %21 = vector.shape_cast %20 : vector<1x4x1xf32> to vector<4x1xf32>
    %22 = vector.broadcast %16 : f32 to vector<4x1xf32>
    %23 = arith.mulf %19, %22 : vector<4x1xf32>
    %24 = arith.addf %21, %23 : vector<4x1xf32>
    %c0_12 = arith.constant 0 : index
    %c0_13 = arith.constant 0 : index
    %c0_14 = arith.constant 0 : index
    %25 = vector.load %arg3[%c0_12, %c0_13, %c0_14] : memref<1x4x1xf32, #tpu.memory_space<vmem>>, vector<1x4x1xf32>
    %26 = vector.shape_cast %25 : vector<1x4x1xf32> to vector<4x1xf32>
    %27 = vector.shape_cast %24 : vector<4x1xf32> to vector<1x4x1xf32>
    tpu.vector_store %arg3[%c0_12, %c0_13, %c0_14], %27 {strides = array<i32>} : memref<1x4x1xf32, #tpu.memory_space<vmem>>, vector<1x4x1xf32>,
    %c0_15 = arith.constant 0 : index
    %c0_16 = arith.constant 0 : index
    %c0_17 = arith.constant 0 : index
    %28 = vector.load %arg4[%c0_15, %c0_16, %c0_17] : memref<1x4x1xf32, #tpu.memory_space<vmem>>, vector<1x4x1xf32>
    %29 = vector.shape_cast %28 : vector<1x4x1xf32> to vector<4x1xf32>
    %30 = arith.addf %29, %13 : vector<4x1xf32>
    %31 = arith.mulf %19, %19 : vector<4x1xf32>
    %cst_18 = arith.constant 1.000000e+00 : f32
    %32 = arith.subf %15, %cst_18 : f32
    %cst_19 = arith.constant 2.560000e+02 : f32
    %33 = arith.mulf %cst_19, %32 : f32
    %34 = arith.mulf %33, %16 : f32
    %35 = vector.broadcast %34 : f32 to vector<4x1xf32>
    %36 = arith.mulf %31, %35 : vector<4x1xf32>
    %37 = arith.addf %30, %36 : vector<4x1xf32>
    %c0_20 = arith.constant 0 : index
    %c0_21 = arith.constant 0 : index
    %c0_22 = arith.constant 0 : index
    %38 = vector.load %arg4[%c0_20, %c0_21, %c0_22] : memref<1x4x1xf32, #tpu.memory_space<vmem>>, vector<1x4x1xf32>
    %39 = vector.shape_cast %38 : vector<1x4x1xf32> to vector<4x1xf32>
    %40 = vector.shape_cast %37 : vector<4x1xf32> to vector<1x4x1xf32>
    tpu.vector_store %arg4[%c0_20, %c0_21, %c0_22], %40 {strides = array<i32>} : memref<1x4x1xf32, #tpu.memory_space<vmem>>, vector<1x4x1xf32>,
    return
  }
  func.func @transform_0(%arg0: i32, %arg1: i32) -> (i32, i32, i32) {
    %c0_i32 = arith.constant 0 : i32
    %c0_i32_0 = arith.constant 0 : i32
    return %arg0, %c0_i32, %arg1 : i32, i32, i32
  }
  func.func @transform_1(%arg0: i32, %arg1: i32) -> (i32, i32, i32) {
    %c0_i32 = arith.constant 0 : i32
    %c0_i32_0 = arith.constant 0 : i32
    %c0_i32_1 = arith.constant 0 : i32
    return %arg0, %c0_i32, %c0_i32_0 : i32, i32, i32
  }
  func.func @transform_2(%arg0: i32, %arg1: i32) -> (i32, i32, i32) {
    %c0_i32 = arith.constant 0 : i32
    %c0_i32_0 = arith.constant 0 : i32
    %c0_i32_1 = arith.constant 0 : i32
    return %arg0, %c0_i32, %c0_i32_0 : i32, i32, i32
  }
}

</mosaic_0001>

<llo_original>
// kernel: tpu_custom_call.1
$region0: #{tpu_custom_call.1}
  #allocation0 [shape = 'u32[]', space=smem, size = 0x4, offset = 0x4, fixed_abs, tag = 'smem constant byte address 0x4 - core index']
  #allocation1 [shape = 'u32[144,128]{1,0:T(1,128)}', space=vmem, size = 0x12000, scoped, tag = 'internal scratch']
  %s0 = inlined_call_operand.hbm [shape: f32[2,4,256], index: 0, kind: input, shape index: {}]
  %s1 = inlined_call_operand.vmem [shape: f32[2,4,1], index: 1, kind: output, shape index: {0}]
  %s2 = inlined_call_operand.vmem [shape: f32[2,4,1], index: 2, kind: output, shape index: {1}]
  %3 = xla_tuple %s1, %s2
  %s4 = sld [smem:[#allocation0]]
  $region53: #{tpu_custom_call.1} parent=0
    _
  %s6 = ssub.s32 1, %s4
  %s7 = scalar_select 0, %s6, %s4
  $region1: #{tpu_custom_call.1} parent=0
    #allocation2 [shape = 'u8[8192]{0}', space=vmem, size = 0x2000, scoped, tag = 'input window, operand 0']
    #allocation3 [shape = 's32[2]{0}', space=sflag, size = 0x8, scoped, tag = 'scoped memory for tpu_custom_call.1']
    %8 = vsyncpa [#allocation3], 0
    %s9 = scalar_lea.sflag [#allocation3], 1
    %10 = vsyncpa %s9, 0
    loop: start=0, step=1, limit=4
    $region2: #{tpu_custom_call.1} parent=1 // loop_pre_header
      _
    $region3: #{tpu_custom_call.1} parent=1 // loop_header
      %s12 = sphi 0, %s16
      %p13 = scmp.ge.s32.totalorder %s12, 4
      %s19 = sphi 0, %s31
      %s20 = sphi 0, %s27
      %s21 = sphi 0, %s19
      %s22 = sphi 0, %s20
      %s23 = sphi 0, %s21
      %s24 = sphi 0, %s22
      %s36 = sphi 0, %s38
      %s39 = sphi 0, %s36
      %s40 = sphi 0, %s39
      %s56 = sphi 0, %s40
      %s62 = sphi 0, %s64
      %s65 = sphi 0, %s62
      %s66 = sphi 0, %s65
      %s82 = sphi 0, %s66
      %s88 = sphi 0, %s90
      %s91 = sphi 0, %s88
      %s92 = sphi 0, %s91
      %s108 = sphi 0, %s92
    $region4: #{tpu_custom_call.1} parent=1 // loop_header_branch
      %15 = sbr.rel (%p13) target = $region8
    $region5: #{tpu_custom_call.1} parent=1 // loop_body
      %s17 = ssub.s32 %s12, 1
      %s18 = ssub.s32 %s12, 2
      %s25 = sadd.s32 1, %s20
      %p26 = scmp.ge.s32.totalorder %s25, 1
      %s27 = scalar_select %p26, 0, %s25
      %s28 = sadd.s32 1, %s19
      %s29 = scalar_select %p26, %s28, %s19
      %p30 = scmp.ge.s32.totalorder %s29, 2
      %s31 = scalar_select %p30, 0, %s29
      %s32 = ssub.s32 %s19, %s31
      %s33 = ssub.s32 %s20, %s27
      %s34 = sor.u32 %s32, %s33
      %p35 = scmp.eq.s32.totalorder %s34, 0
      %s37 = sadd.s32 %s36, 1
      %s38 = scalar_select %p35, %s36, %s37
      %p41 = pneg %p35
      %p42 = scmp.eq.s32.totalorder %s12, 1
      %p43 = por %p41, %p42
      %p44 = scmp.ne.s32.totalorder %s36, %s39
      %p45 = scmp.eq.s32.totalorder %s12, 0
      %p46 = por %p44, %p45
      %p47 = scmp.ne.s32.totalorder %s36, %s39
      %p48 = scmp.eq.s32.totalorder %s17, 1
      %p49 = por %p47, %p48
      %p50 = scmp.ne.s32.totalorder %s39, %s40
      %p51 = scmp.eq.s32.totalorder %s17, 0
      %p52 = por %p50, %p51
      %p53 = scmp.ne.s32.totalorder %s39, %s40
      %p54 = scmp.eq.s32.totalorder %s18, 1
      %p55 = por %p53, %p54
      %p57 = scmp.ne.s32.totalorder %s40, %s56
      %p58 = scmp.eq.s32.totalorder %s18, 0
      %p59 = por %p57, %p58
      %s60 = ssub.s32 %s19, %s31
      %p61 = scmp.eq.s32.totalorder %s60, 0
      %s63 = sadd.s32 %s62, 1
      %s64 = scalar_select %p61, %s62, %s63
      %p67 = pneg %p61
      %p68 = scmp.eq.s32.totalorder %s12, 1
      %p69 = por %p67, %p68
      %p70 = scmp.ne.s32.totalorder %s62, %s65
      %p71 = scmp.eq.s32.totalorder %s12, 0
      %p72 = por %p70, %p71
      %p73 = scmp.ne.s32.totalorder %s62, %s65
      %p74 = scmp.eq.s32.totalorder %s17, 1
      %p75 = por %p73, %p74
      %p76 = scmp.ne.s32.totalorder %s65, %s66
      %p77 = scmp.eq.s32.totalorder %s17, 0
      %p78 = por %p76, %p77
      %p79 = scmp.ne.s32.totalorder %s65, %s66
      %p80 = scmp.eq.s32.totalorder %s18, 1
      %p81 = por %p79, %p80
      %p83 = scmp.ne.s32.totalorder %s66, %s82
      %p84 = scmp.eq.s32.totalorder %s18, 0
      %p85 = por %p83, %p84
      %s86 = ssub.s32 %s19, %s31
      %p87 = scmp.eq.s32.totalorder %s86, 0
      %s89 = sadd.s32 %s88, 1
      %s90 = scalar_select %p87, %s88, %s89
      %p93 = pneg %p87
      %p94 = scmp.eq.s32.totalorder %s12, 1
      %p95 = por %p93, %p94
      %p96 = scmp.ne.s32.totalorder %s88, %s91
      %p97 = scmp.eq.s32.totalorder %s12, 0
      %p98 = por %p96, %p97
      %p99 = scmp.ne.s32.totalorder %s88, %s91
      %p100 = scmp.eq.s32.totalorder %s17, 1
      %p101 = por %p99, %p100
      %p102 = scmp.ne.s32.totalorder %s91, %s92
      %p103 = scmp.eq.s32.totalorder %s17, 0
      %p104 = por %p102, %p103
      %p105 = scmp.ne.s32.totalorder %s91, %s92
      %p106 = scmp.eq.s32.totalorder %s18, 1
      %p107 = por %p105, %p106
      %p109 = scmp.ne.s32.totalorder %s92, %s108
      %p110 = scmp.eq.s32.totalorder %s18, 0
      %p111 = por %p109, %p110
      %p112 = scmp.le.s32.totalorder 1, %s12
      %p113 = scmp.lt.s32.totalorder %s12, 3
      %p114 = pnand %p112, %p113
      %p115 = pneg %p114
      // Predicated region
      $region9: #{tpu_custom_call.1} parent=5 // pred_check
        _
      $region10: #{tpu_custom_call.1} parent=5 // pred_check_branch
        %117 = sbr.rel (%p114) target = $region12
      $region11: #{tpu_custom_call.1} parent=5 // pred_region
        %s118 = ssub.s32 %s12, 1
      $region12: #{tpu_custom_call.1} parent=5 // pred_fallthru
        _
      %p119 = scmp.lt.s32.totalorder %s12, 2
      // Predicated region
      $region13: #{tpu_custom_call.1} parent=5 // pred_check
        %p120 = pneg %p119
      $region14: #{tpu_custom_call.1} parent=5 // pred_check_branch
        %122 = sbr.rel (%p120) target = $region16
      $region15: #{tpu_custom_call.1} parent=5 // pred_region
        // Predicated region
        $region17: #{tpu_custom_call.1} parent=15 // pred_check
          %p123 = pneg %p46
        $region18: #{tpu_custom_call.1} parent=15 // pred_check_branch
          %125 = sbr.rel (%p123) target = $region20
        $region19: #{tpu_custom_call.1} parent=15 // pred_region
          %s126 = sand.u32 %s36, 1
          %s127 = scalar_lea.sflag [#allocation3], %s126
          %s128 = sand.u32 %s36, 1
          %s129 = smul.addr %s128, 8
          %s130 = scalar_lea.vmem [#allocation2], %s129
          %s131 = smul.u32 2, %s20
          %s133 = ssub.s32 128, 128
          %134 = vsyncadd %s127, %s133
          %s135 = smul.addr %s19, 2
          %s136 = sadd.s32 %s131, %s135
          %s137 = smul.addr %s136, 64
          %s138 = scalar_lea.hbm %s0, %s137
          %s140 = sshll.u32 %s130, 4
          %s141 = int_to_ptr.vmem [resolvable:$true] %s140
          %143 = dma.hbm_to_vmem [thread:$0]  %s138, 128, %s141, %s127
        $region20: #{tpu_custom_call.1} parent=15 // pred_fallthru
          _
      $region16: #{tpu_custom_call.1} parent=5 // pred_fallthru
        _
      %p144 = scmp.le.s32.totalorder 1, %s12
      %p145 = scmp.lt.s32.totalorder %s12, 3
      %p146 = pnand %p144, %p145
      %p147 = pneg %p146
      // Predicated region
      $region21: #{tpu_custom_call.1} parent=5 // pred_check
        _
      $region22: #{tpu_custom_call.1} parent=5 // pred_check_branch
        %149 = sbr.rel (%p146) target = $region24
      $region23: #{tpu_custom_call.1} parent=5 // pred_region
        %s150 = ssub.s32 %s12, 1
        %s151 = sand.u32 %s39, 1
        %s152 = scalar_lea.sflag [#allocation3], %s151
        %s153 = sand.u32 %s39, 1
        %s154 = smul.addr %s153, 8
        %s155 = scalar_lea.vmem [#allocation2], %s154
        // Predicated region
        $region25: #{tpu_custom_call.1} parent=23 // pred_check
          %p156 = pneg %p52
        $region26: #{tpu_custom_call.1} parent=23 // pred_check_branch
          %158 = sbr.rel (%p156) target = $region28
        $region27: #{tpu_custom_call.1} parent=23 // pred_region
          %159 = dma.done %s152, 128
        $region28: #{tpu_custom_call.1} parent=23 // pred_fallthru
          _
        %s160 = sand.u32 %s39, 1
        %s161 = scalar_lea.sflag [#allocation3], %s160
        %s162 = sand.u32 %s39, 1
        %s163 = smul.addr %s162, 8
        %s164 = scalar_lea.vmem [#allocation2], %s163
        %p165 = pneg %p52
        %p166 = pneg %p49
        %p167 = pneg %p78
        %p168 = pneg %p75
        %p169 = scmp.lt.s32.totalorder %s21, 1
        %s170 = scalar_select %p169, %s21, 1
        %s171 = smul.addr %s170, 4
        %s172 = scalar_lea.vmem %s1, %s171
        %p173 = pneg %p104
        %p174 = pneg %p101
        %p175 = scmp.lt.s32.totalorder %s21, 1
        %s176 = scalar_select %p175, %s21, 1
        %s177 = smul.addr %s176, 4
        %s178 = scalar_lea.vmem %s2, %s177
        %s179 = smul.u32 2, %s22
        %p180 = scmp.lt.s32.totalorder %s21, 1
        %s181 = scalar_select %p180, %s21, 1
        %s182 = smul.addr %s181, 4
        %s183 = scalar_lea.vmem %s1, %s182
        %p184 = scmp.lt.s32.totalorder %s21, 1
        %s185 = scalar_select %p184, %s21, 1
        %s186 = smul.addr %s185, 4
        %s187 = scalar_lea.vmem %s2, %s186
        %p188 = scmp.eq.s32.totalorder %s22, 0
        // Predicated region
        $region29: #{tpu_custom_call.1} parent=23 // pred_check
          %p189 = pneg %p188
        $region30: #{tpu_custom_call.1} parent=23 // pred_check_branch
          %191 = sbr.rel (%p189) target = $region32
        $region31: #{tpu_custom_call.1} parent=23 // pred_region
          %vm192 = vcmask 3072
          %193 = vst.msk [vmem:[%s183] sm:$0xf] %vm192, 0.0
          %194 = vst.msk [vmem:[%s187] sm:$0xf] %vm192, 0.0
        $region32: #{tpu_custom_call.1} parent=23 // pred_fallthru
          _
        %v195 = vld [vmem:[%s155] sm:$0xff]
        %v197 = vcombine.high %v195, %v195
        %vm199 = vcmask 1043456
        %v200 = vsel %vm199, %v195, 0.0
        %v201 = vsel %vm199, %v197, 0.0
        %v202 = vadd.f32 %v200, %v201
        %203 = vadd.xlane.f32.xlu0 %v202
        %v204 = vpop.xlane.xlu0 %203
        %v205 = vmul.f32 %v204, 0.00390625
        %v208 = vunpack.c.l.s4 839922192
        %v209 = vunpack.c.0.s8 %v208
        %v210 = vlaneseq
        %v211 = vshrl.u32 %v210, 7
        %v212 = vsub.s32 %v209, %v211
        %v213 = vrot.slane %v205, %v212
        %v215 = vsub.f32 %v195, %v213
        %v216 = vmul.f32 %v215, %v215
        %v218 = vcombine.high %v216, %v216
        %v220 = vsel %vm199, %v216, 0.0
        %v221 = vsel %vm199, %v218, 0.0
        %v222 = vadd.f32 %v220, %v221
        %223 = vadd.xlane.f32.xlu0 %v222
        %v224 = vpop.xlane.xlu0 %223
        %s225 = sadd.s32 %s22, 1
        %s226 = scvt.s32.f32 %s225
        %v227 = vstv %s226
        %v228 = vrcp.pop %v227
        %s229 = vtos %v228
        %v230 = vld [vmem:[%s183] sm:$0xf]
        %v231 = vsub.f32 %v205, %v230
        %v232 = vstv %s229
        %v233 = vmul.f32 %v231, %v232
        %v234 = vadd.f32 %v230, %v233
        %vm235 = vcmask 3072
        %236 = vst.msk [vmem:[%s183] sm:$0xf] %vm235, %v234
        %v237 = vld [vmem:[%s187] sm:$0xf]
        %v238 = vadd.f32 %v237, %v224
        %v239 = vmul.f32 %v231, %v231
        %s240 = ssub.f32 %s226, 1.0
        %s241 = smul.f32 %s240, 256.0
        %s242 = smul.f32 %s241, %s229
        %v243 = vstv %s242
        %v244 = vmul.f32 %v239, %v243
        %v245 = vadd.f32 %v238, %v244
        %246 = vst.msk [vmem:[%s187] sm:$0xf] %vm235, %v245
        %p247 = scmp.lt.s32.totalorder %s21, 1
        %s248 = scalar_select %p247, %s21, 1
        %s249 = smul.addr %s248, 4
        %s250 = scalar_lea.vmem %s1, %s249
        %p251 = scmp.lt.s32.totalorder %s21, 1
        %s252 = scalar_select %p251, %s21, 1
        %s253 = smul.addr %s252, 4
        %s254 = scalar_lea.vmem %s2, %s253
        // Predicated region
        $region33: #{tpu_custom_call.1} parent=23 // pred_check
          %p255 = pneg %p75
        $region34: #{tpu_custom_call.1} parent=23 // pred_check_branch
          %257 = sbr.rel (%p255) target = $region36
        $region35: #{tpu_custom_call.1} parent=23 // pred_region
          _
        $region36: #{tpu_custom_call.1} parent=23 // pred_fallthru
          _
        // Predicated region
        $region37: #{tpu_custom_call.1} parent=23 // pred_check
          %p258 = pneg %p101
        $region38: #{tpu_custom_call.1} parent=23 // pred_check_branch
          %260 = sbr.rel (%p258) target = $region40
        $region39: #{tpu_custom_call.1} parent=23 // pred_region
          _
        $region40: #{tpu_custom_call.1} parent=23 // pred_fallthru
          _
      $region24: #{tpu_custom_call.1} parent=5 // pred_fallthru
        _
      %p261 = scmp.le.s32.totalorder 2, %s12
      // Predicated region
      $region41: #{tpu_custom_call.1} parent=5 // pred_check
        %p262 = pneg %p261
      $region42: #{tpu_custom_call.1} parent=5 // pred_check_branch
        %264 = sbr.rel (%p262) target = $region44
      $region43: #{tpu_custom_call.1} parent=5 // pred_region
        %s265 = ssub.s32 %s12, 2
        // Predicated region
        $region45: #{tpu_custom_call.1} parent=43 // pred_check
          %p266 = pneg %p81
        $region46: #{tpu_custom_call.1} parent=43 // pred_check_branch
          %268 = sbr.rel (%p266) target = $region48
        $region47: #{tpu_custom_call.1} parent=43 // pred_region
          %p269 = scmp.lt.s32.totalorder %s23, 1
          %s270 = scalar_select %p269, %s23, 1
          %s271 = smul.addr %s270, 4
          %s272 = scalar_lea.vmem %s1, %s271
        $region48: #{tpu_custom_call.1} parent=43 // pred_fallthru
          _
        // Predicated region
        $region49: #{tpu_custom_call.1} parent=43 // pred_check
          %p273 = pneg %p107
        $region50: #{tpu_custom_call.1} parent=43 // pred_check_branch
          %275 = sbr.rel (%p273) target = $region52
        $region51: #{tpu_custom_call.1} parent=43 // pred_region
          %p276 = scmp.lt.s32.totalorder %s23, 1
          %s277 = scalar_select %p276, %s23, 1
          %s278 = smul.addr %s277, 4
          %s279 = scalar_lea.vmem %s2, %s278
        $region52: #{tpu_custom_call.1} parent=43 // pred_fallthru
          _
      $region44: #{tpu_custom_call.1} parent=5 // pred_fallthru
        _
    $region6: #{tpu_custom_call.1} parent=1 // loop_footer
      %s16 = sadd.s32 1, %s12
    $region7: #{tpu_custom_call.1} parent=1 // loop_footer_branch
      %11 = sbr.rel target = $region3
    $region8: #{tpu_custom_call.1} parent=1 // loop_exit
      _
    %280 = vsyncpa [#allocation3], 1
    %s281 = scalar_lea.sflag [#allocation3], 1
    %282 = vsyncpa %s281, 1

</llo_original>
